<compile_context>
chip_gen: v5e
topology: v5e:2x2
jax: 0.10.0
libtpu: 0.0.40
codegen_flags: <defaults>
</compile_context>

<pallas_src>
import jax
import jax.numpy as jnp
from jax.experimental import pallas as pl
from jax.experimental.pallas import tpu as pltpu


# ----------------------------- shared math helpers -----------------------------

def _round_up(v, m):
    return ((v + m - 1) // m) * m


def _layer_norm(x, w, b, eps=1e-5):
    """PyTorch nn.LayerNorm over the last dim (population variance)."""
    mu = jnp.mean(x, axis=-1, keepdims=True)
    xc = x - mu
    var = jnp.mean(xc * xc, axis=-1, keepdims=True)
    return xc * jax.lax.rsqrt(var + eps) * w + b


def _gelu_exact(x):
    """Exact (erf-based) GELU matching F.gelu(approximate='none').

    erf() via the Abramowitz&Stegun 7.1.26 rational approximation (abs err ~1.5e-7)
    so only exp() is needed inside the Mosaic kernel.
    """
    z = x * 0.7071067811865476
    a = jnp.abs(z)
    t = 1.0 / (1.0 + 0.3275911 * a)
    poly = t * (0.254829592 + t * (-0.284496736 + t * (1.421413741
               + t * (-1.453152027 + t * 1.061405429))))
    erf_abs = 1.0 - poly * jnp.exp(-a * a)
    erf = jnp.where(z >= 0, erf_abs, -erf_abs)
    return 0.5 * x * (1.0 + erf)


# ----------------------------- parameter construction --------------------------

def init_params(key, *, in_channels, patch, img, emb, depth, mlp, num_classes):
    S = (img // patch) ** 2 + 1
    keys = iter(jax.random.split(key, 64))

    def rnd(shape, scale=0.02):
        return scale * jax.random.normal(next(keys), shape, jnp.float32)

    p = {
        "proj_w": rnd((emb, in_channels, patch, patch)),   # Conv2d weight
        "proj_b": rnd((emb,)),
        "cls": rnd((1, 1, emb), 1.0),                      # torch.randn
        "pos": rnd((1, S, emb), 1.0),
        "layers": [],
        "head_ln_w": jnp.ones((emb,), jnp.float32),
        "head_ln_b": jnp.zeros((emb,), jnp.float32),
        "head_w": rnd((num_classes, emb)),
        "head_b": rnd((num_classes,)),
    }
    for _ in range(depth):
        p["layers"].append(dict(
            in_w=rnd((3 * emb, emb)), in_b=rnd((3 * emb,)),
            out_w=rnd((emb, emb)), out_b=rnd((emb,)),
            ln1_w=jnp.ones((emb,), jnp.float32), ln1_b=jnp.zeros((emb,), jnp.float32),
            ln2_w=jnp.ones((emb,), jnp.float32), ln2_b=jnp.zeros((emb,), jnp.float32),
            w1=rnd((mlp, emb)), b1=rnd((mlp,)),
            w2=rnd((emb, mlp)), b2=rnd((emb,)),
        ))
    return p


# ----------------------------- Pallas forward ----------------------------------

def vit_forward(x_img, params, *, heads):
    B, C, H, W = x_img.shape
    proj_w = params["proj_w"]
    E = proj_w.shape[0]
    p_sz = proj_w.shape[2]
    Hp, Wp = H // p_sz, W // p_sz
    P = Hp * Wp
    S = P + 1
    Spad = _round_up(S, 8)             # sublane-aligned tokens per batch block
    R = B * Spad                       # total activation rows
    Cpp = C * p_sz * p_sz
    depth = len(params["layers"])
    Dh = E // heads
    assert heads * Dh == E
    mlp = params["layers"][0]["w1"].shape[0]
    ncls = params["head_w"].shape[0]
    E3 = 3 * E
    NHP = _round_up(heads, 128)        # lane-padded heads dim for lane-dense score tiles
    NCP = _round_up(ncls, 128)         # lane-padded classifier width
    VP = _round_up(max(E3, mlp), 128)  # packed per-layer-vector slab width
    HP = _round_up(max(E, NCP), 128)   # packed head-vector slab width
    scale = 1.0 / (Dh ** 0.5)

    # ------------- glue: patch extraction + parameter repacking (plain JAX) -------------
    patches = x_img.reshape(B, C, Hp, p_sz, Wp, p_sz)
    patches = patches.transpose(0, 2, 4, 1, 3, 5).reshape(B, P, Cpp)
    # row 0 of each batch block is an all-zero "patch" (CLS slot); rows S..Spad-1 are
    # zero padding so every per-batch block is a multiple of 8 rows.
    patches_aug = jnp.zeros((B, Spad, Cpp), jnp.float32).at[:, 1:S, :].set(patches)
    patches_flat = patches_aug.reshape(R, Cpp).astype(jnp.bfloat16)

    # additive term per token row: conv bias + positional emb; CLS token folded into row 0
    add = jnp.zeros((B, Spad, E), jnp.float32)
    add = add.at[:, 1:S, :].set(
        jnp.broadcast_to(params["pos"][0, 1:S] + params["proj_b"], (B, S - 1, E)))
    add = add.at[:, 0, :].set(
        jnp.broadcast_to(params["cls"][0, 0] + params["pos"][0, 0], (B, E)))
    add_flat = add.reshape(R, E)

    wp_t = proj_w.reshape(E, Cpp).T.astype(jnp.bfloat16)     # [Cpp, E]

    def stack(fn, dtype=None):
        a = jnp.stack([fn(l) for l in params["layers"]], axis=0)
        return a.astype(dtype) if dtype is not None else a

    # fused QKV weight, attention scale folded into the Q block
    def qkv_w(l):
        w = l["in_w"]                                                # [3E, E]
        return jnp.concatenate([w[:E] * scale, w[E:]], axis=0).T    # [E, 3E]

    wqkv_s = stack(qkv_w, jnp.bfloat16)                      # [D, E, 3E]
    wo_s = stack(lambda l: l["out_w"].T, jnp.bfloat16)       # [D, E, E]
    w1_s = stack(lambda l: l["w1"].T, jnp.bfloat16)          # [D, E, mlp]
    w2_s = stack(lambda l: l["w2"].T, jnp.bfloat16)          # [D, mlp, E]

    # pack ALL small per-layer vectors into one [D, 8, VP] slab (one DMA stream)
    def pack_vecs(l):
        v = jnp.zeros((8, VP), jnp.float32)
        v = v.at[0, :E3].set(jnp.concatenate([l["in_b"][:E] * scale, l["in_b"][E:]]))
        v = v.at[1, :E].set(l["out_b"])
        v = v.at[2, :E].set(l["ln1_w"])
        v = v.at[3, :E].set(l["ln1_b"])
        v = v.at[4, :E].set(l["ln2_w"])
        v = v.at[5, :E].set(l["ln2_b"])
        v = v.at[6, :mlp].set(l["b1"])
        v = v.at[7, :E].set(l["b2"])
        return v

    vec_s = stack(pack_vecs)                                 # [D, 8, VP] f32

    # 0/1 head-block selector matrices, lane-padded to 128 so score tiles are lane-dense:
    # head-reduce ([E]->[NHP]) and head-expand ([NHP]->[E]) run as bf16 MXU matmuls.
    eye_h = jnp.eye(heads, dtype=jnp.float32)
    hsel = jnp.zeros((E, NHP), jnp.float32).at[:, :heads].set(
        jnp.repeat(eye_h, Dh, axis=0)).astype(jnp.bfloat16)          # [E, NHP]
    hexp = jnp.zeros((NHP, E), jnp.float32).at[:heads, :].set(
        jnp.repeat(eye_h, Dh, axis=1)).astype(jnp.bfloat16)          # [NHP, E]

    # head params packed into one small const slab + padded head weight
    hvec = jnp.zeros((8, HP), jnp.float32)
    hvec = hvec.at[0, :E].set(params["head_ln_w"])
    hvec = hvec.at[1, :E].set(params["head_ln_b"])
    hvec = hvec.at[2, :ncls].set(params["head_b"])
    wh_pad = jnp.zeros((E, NCP), jnp.float32).at[:, :ncls].set(
        params["head_w"].T).astype(jnp.bfloat16)

    # ----------------- stage 1: patch embedding (single-step pallas_call) ----------------
    def embed_kernel(p_ref, w_ref, add_ref, o_ref):
        o_ref[...] = (jnp.dot(p_ref[...], w_ref[...],
                              preferred_element_type=jnp.float32) + add_ref[...])

    x0 = pl.pallas_call(
        embed_kernel,
        out_shape=jax.ShapeDtypeStruct((R, E), jnp.float32),
    )(patches_flat, wp_t, add_flat)

    # ----------------- stage 2: depth-grid encoder + classifier head ---------------------
    def kernel(x0_hbm, wqkv_ref, wo_ref, w1_ref, w2_ref, vec_ref,
               hsel_ref, hexp_ref, hvec_ref, wh_ref,
               out_ref, x_scr, dma_sem):
        d = pl.program_id(0)

        # pull the embedded activations from HBM into the persistent scratch (once)
        @pl.when(d == 0)
        def _load_embed():
            cp = pltpu.make_async_copy(x0_hbm, x_scr, dma_sem)
            cp.start()
            cp.wait()

        vec = vec_ref[0]                               # [8, VP] packed per-layer vectors
        bqkv = vec[0:1, :E3]
        bo = vec[1:2, :E]
        ln1w, ln1b = vec[2:3, :E], vec[3:4, :E]
        ln2w, ln2b = vec[4:5, :E], vec[5:6, :E]
        b1 = vec[6:7, :mlp]
        b2 = vec[7:8, :E]

        x = x_scr[...]                                 # [R, E] f32 residual stream
        xb = x.astype(jnp.bfloat16)

        # ---- fused QKV projection: one [R,E]@[E,3E] bf16 matmul, f32 accumulate ----
        qkv = jnp.dot(xb, wqkv_ref[0], preferred_element_type=jnp.float32) + bqkv
        q = qkv[:, 0:E]                # softmax scale already folded into Q weight/bias
        k = qkv[:, E:2 * E]
        v = qkv[:, 2 * E:3 * E]

        hsel_m = hsel_ref[...]                         # [E, NHP] bf16
        hexp_m = hexp_ref[...]                         # [NHP, E] bf16

        def tile_rows(blk):                            # repeat a [Spad,E] key/value block
            return jnp.concatenate([blk] * B, axis=0) if B > 1 else blk

        # ---- attention across the batch axis (batch_first=False semantics) ----
        # single loop over key-batch m; scores for ALL query rows at once: [R, NHP]
        scs = []
        for m in range(B):
            k_t = tile_rows(k[m * Spad:(m + 1) * Spad, :])                  # [R, E]
            scs.append(jnp.dot((q * k_t).astype(jnp.bfloat16), hsel_m,
                               preferred_element_type=jnp.float32))         # [R, NHP]
        mx = scs[0]
        for m in range(1, B):
            mx = jnp.maximum(mx, scs[m])
        es = [jnp.exp(s - mx) for s in scs]
        den = es[0]
        for m in range(1, B):
            den = den + es[m]
        inv = pl.reciprocal(den, approx=True)          # EUP, not VPU

        ctx = None                                     # [R, E] f32 context accumulator
        for m in range(B):
            p_full = jnp.dot((es[m] * inv).astype(jnp.bfloat16), hexp_m,
                             preferred_element_type=jnp.float32)            # [R, E]
            v_t = tile_rows(v[m * Spad:(m + 1) * Spad, :])
            term = p_full * v_t
            ctx = term if ctx is None else ctx + term

        # ---- output projection + post-norm residual (PyTorch norm_first=False) ----
        attn = jnp.dot(ctx.astype(jnp.bfloat16), wo_ref[0],
                       preferred_element_type=jnp.float32) + bo
        y = _layer_norm(x + attn, ln1w, ln1b)

        # ---- MLP ----
        hmid = _gelu_exact(jnp.dot(y.astype(jnp.bfloat16), w1_ref[0],
                                   preferred_element_type=jnp.float32) + b1)
        ff = jnp.dot(hmid.astype(jnp.bfloat16), w2_ref[0],
                     preferred_element_type=jnp.float32) + b2
        xn = _layer_norm(y + ff, ln2w, ln2b)
        x_scr[...] = xn

        # ---- classifier head on CLS tokens (last grid step), one lane-dense store ----
        @pl.when(d == depth - 1)
        def _head():
            hv = hvec_ref[...]
            lnw, lnb, bh = hv[0:1, :E], hv[1:2, :E], hv[2:3, :NCP]
            # gather rows b*Spad (CLS of each batch) via a 0/1 selector matmul
            rid = jax.lax.broadcasted_iota(jnp.int32, (B, R), 1)
            tgt = jax.lax.broadcasted_iota(jnp.int32, (B, R), 0) * Spad
            sel = (rid == tgt).astype(jnp.float32)                          # [B, R]
            cls_rows = jnp.dot(sel, xn, preferred_element_type=jnp.float32)  # [B, E]
            cls_n = _layer_norm(cls_rows, lnw, lnb)
            out_ref[...] = (jnp.dot(cls_n.astype(jnp.bfloat16), wh_ref[...],
                                    preferred_element_type=jnp.float32) + bh)

    def const2(shape):   # resident across the depth grid (block index never changes)
        return pl.BlockSpec(shape, lambda d: (0, 0))

    def layer3(shape):   # per-layer weight slab, streamed/double-buffered by Pallas
        return pl.BlockSpec(shape, lambda d: (d, 0, 0))

    grid_spec = pltpu.PrefetchScalarGridSpec(
        num_scalar_prefetch=0,
        grid=(depth,),
        in_specs=[
            pl.BlockSpec(memory_space=pl.ANY),   # embedded activations (HBM, DMA'd at d==0)
            layer3((1, E, E3)),                  # fused QKV weight (bf16, streamed)
            layer3((1, E, E)),                   # out-proj weight (bf16)
            layer3((1, E, mlp)),                 # mlp w1 (bf16)
            layer3((1, mlp, E)),                 # mlp w2 (bf16)
            layer3((1, 8, VP)),                  # all small per-layer vectors (f32)
            const2((E, NHP)),                    # head-reduce selector (bf16, lane-dense)
            const2((NHP, E)),                    # head-expand selector (bf16)
            const2((8, HP)),                     # head LN w/b + head bias (f32)
            const2((E, NCP)),                    # head weight (bf16, lane-padded to 128)
        ],
        out_specs=pl.BlockSpec((B, NCP), lambda d: (0, 0)),
        scratch_shapes=[pltpu.VMEM((R, E), jnp.float32),    # persistent activations
                        pltpu.SemaphoreType.DMA(())],       # sem for the d==0 DMA
    )

    # VMEM budget: 3/4 of physical (cap 96 MiB) -> ~48 MiB on v7x, ~96 MiB on v5e/v6e.
    try:
        vmem_cap = int(pltpu.get_tpu_info().vmem_capacity_bytes)
    except Exception:
        vmem_cap = 128 * 1024 * 1024
    vmem_limit = int(max(32 * 1024 * 1024, min((vmem_cap * 3) // 4, 96 * 1024 * 1024)))

    out_pad = pl.pallas_call(
        kernel,
        out_shape=jax.ShapeDtypeStruct((B, NCP), jnp.float32),
        grid_spec=grid_spec,
        compiler_params=pltpu.CompilerParams(
            dimension_semantics=("arbitrary",),          # sequential layer dependency
            vmem_limit_bytes=vmem_limit),
    )(x0, wqkv_s, wo_s, w1_s, w2_s, vec_s, hsel, hexp, hvec, wh_pad)

    return out_pad[:, :ncls]


# ----------------------------- pure-JAX reference (for checking) ---------------

def vit_reference(x_img, params, *, heads):
    B, C, H, W = x_img.shape
    proj_w = params["proj_w"]
    E, p_sz = proj_w.shape[0], proj_w.shape[2]
    Hp, Wp = H // p_sz, W // p_sz
    P = Hp * Wp
    Cpp = C * p_sz * p_sz
    Dh = E // heads

    patches = x_img.reshape(B, C, Hp, p_sz, Wp, p_sz).transpose(0, 2, 4, 1, 3, 5)
    patches = patches.reshape(B, P, Cpp)
    emb = jnp.einsum("bpc,ec->bpe", patches, proj_w.reshape(E, Cpp)) + params["proj_b"]
    t = jnp.concatenate([jnp.broadcast_to(params["cls"], (B, 1, E)), emb], axis=1)
    t = t + params["pos"]                      # transformer sees (L=B, N=S, E)

    for lyr in params["layers"]:
        wq, wk, wv = lyr["in_w"][:E], lyr["in_w"][E:2 * E], lyr["in_w"][2 * E:]
        bq, bk, bv = lyr["in_b"][:E], lyr["in_b"][E:2 * E], lyr["in_b"][2 * E:]
        q = jnp.einsum("lne,fe->lnf", t, wq) + bq
        k = jnp.einsum("lne,fe->lnf", t, wk) + bk
        v = jnp.einsum("lne,fe->lnf", t, wv) + bv
        L, N = q.shape[0], q.shape[1]
        q4 = q.reshape(L, N, heads, Dh)
        k4 = k.reshape(L, N, heads, Dh)
        v4 = v.reshape(L, N, heads, Dh)
        sc = jnp.einsum("lnhd,mnhd->lmnh", q4, k4) / (Dh ** 0.5)
        p = jax.nn.softmax(sc, axis=1)
        o = jnp.einsum("lmnh,mnhd->lnhd", p, v4).reshape(L, N, E)
        attn = jnp.einsum("lne,fe->lnf", o, lyr["out_w"]) + lyr["out_b"]
        t = _layer_norm(t + attn, lyr["ln1_w"], lyr["ln1_b"])
        ff = jax.nn.gelu(jnp.einsum("lne,fe->lnf", t, lyr["w1"]) + lyr["b1"],
                         approximate=False)
        ff = jnp.einsum("lnf,ef->lne", ff, lyr["w2"]) + lyr["b2"]
        t = _layer_norm(t + ff, lyr["ln2_w"], lyr["ln2_b"])

    cls_out = _layer_norm(t[:, 0], params["head_ln_w"], params["head_ln_b"])
    return jnp.einsum("be,ce->bc", cls_out, params["head_w"]) + params["head_b"]


# ----------------------------------- main ---------------------------------------

if __name__ == "__main__":
    # small shapes consistent with the module's forward
    B, C, IMG, PATCH = 2, 4, 16, 4
    EMB, DEPTH, HEADS, MLP, NCLS = 32, 2, 4, 64, 10

    key = jax.random.PRNGKey(0)
    kx, kp = jax.random.split(key)
    x = jax.random.normal(kx, (B, C, IMG, IMG), jnp.float32)
    params = init_params(kp, in_channels=C, patch=PATCH, img=IMG, emb=EMB,
                         depth=DEPTH, mlp=MLP, num_classes=NCLS)

    out = vit_forward(x, params, heads=HEADS)
    out = jax.block_until_ready(out)

    ref = vit_reference(x, params, heads=HEADS)
    assert out.shape == (B, NCLS)
    assert bool(jnp.all(jnp.isfinite(out)))
    # matmul operands are bf16 (f32 accumulation), so compare with a bf16-appropriate tol
    assert bool(jnp.allclose(out, ref, atol=2e-2, rtol=2e-2)), (
        f"max abs err {float(jnp.max(jnp.abs(out - ref)))}")
    print("KERNEL_OK")
</pallas_src>

<mosaic_0001>
module attributes {stable_mosaic.version = 11 : i64} {
  func.func @embed_kernel(%arg0: memref<48x64xbf16, #tpu.memory_space<vmem>>, %arg1: memref<64x32xbf16, #tpu.memory_space<vmem>>, %arg2: memref<48x32xf32, #tpu.memory_space<vmem>>, %arg3: memref<48x32xf32, #tpu.memory_space<vmem>>) attributes {dimension_semantics = [], scalar_prefetch = 0 : i64, scratch_operands = 0 : i64, tpu.core_type = #tpu.core_type<tc>} {
    %c0 = arith.constant 0 : index
    %c0_0 = arith.constant 0 : index
    %0 = vector.load %arg0[%c0, %c0_0] : memref<48x64xbf16, #tpu.memory_space<vmem>>, vector<48x64xbf16>
    %c0_1 = arith.constant 0 : index
    %c0_2 = arith.constant 0 : index
    %1 = vector.load %arg1[%c0_1, %c0_2] : memref<64x32xbf16, #tpu.memory_space<vmem>>, vector<64x32xbf16>
    %cst = arith.constant dense<0.000000e+00> : vector<48x32xf32>
    %2 = tpu.matmul %0, %1, %cst {dimension_numbers = #tpu.dot_dimension_numbers<[1], [0], [0], [1], [0, 0, 1, 1], [], []>} : vector<48x64xbf16>, vector<64x32xbf16>, vector<48x32xf32> -> vector<48x32xf32>
    %c0_3 = arith.constant 0 : index
    %c0_4 = arith.constant 0 : index
    %3 = vector.load %arg2[%c0_3, %c0_4] : memref<48x32xf32, #tpu.memory_space<vmem>>, vector<48x32xf32>
    %4 = arith.addf %2, %3 : vector<48x32xf32>
    %c0_5 = arith.constant 0 : index
    %c0_6 = arith.constant 0 : index
    %5 = vector.load %arg3[%c0_5, %c0_6] : memref<48x32xf32, #tpu.memory_space<vmem>>, vector<48x32xf32>
    tpu.vector_store %arg3[%c0_5, %c0_6], %4 {strides = array<i32>} : memref<48x32xf32, #tpu.memory_space<vmem>>, vector<48x32xf32>,
    return
  }
}

</mosaic_0001>

<llo_original>
// kernel: tpu_custom_call.1
$region0: #{tpu_custom_call.1}
  #allocation0 [shape = 'u32[]', space=smem, size = 0x4, offset = 0x4, fixed_abs, tag = 'smem constant byte address 0x4 - core index']
  #allocation1 [shape = 'u32[72,128]{1,0:T(1,128)}', space=vmem, size = 0x9000, scoped, tag = 'internal scratch']
  %s0 = inlined_call_operand.vmem [shape: bf16[48,64], index: 0, kind: input, shape index: {}]
  %s1 = inlined_call_operand.vmem [shape: bf16[64,32], index: 1, kind: input, shape index: {}]
  %s2 = inlined_call_operand.vmem [shape: f32[48,32], index: 2, kind: input, shape index: {}]
  %s3 = inlined_call_operand.vmem [shape: f32[48,32], index: 3, kind: output, shape index: {}]
  %s4 = sld [smem:[#allocation0]]
  $region22: #{tpu_custom_call.1} parent=0
    _
  %s6 = ssub.s32 1, %s4
  %s7 = scalar_select 0, %s6, %s4
  // Predicated region
  $region2: #{tpu_custom_call.1} parent=0 // pred_check
    _
  $region3: #{tpu_custom_call.1} parent=0 // pred_check_branch
    %9 = sbr.rel (0) target = $region5
  $region4: #{tpu_custom_call.1} parent=0 // pred_region
    _
  $region5: #{tpu_custom_call.1} parent=0 // pred_fallthru
    _
  // Predicated region
  $region6: #{tpu_custom_call.1} parent=0 // pred_check
    _
  $region7: #{tpu_custom_call.1} parent=0 // pred_check_branch
    %11 = sbr.rel (0) target = $region9
  $region8: #{tpu_custom_call.1} parent=0 // pred_region
    _
  $region9: #{tpu_custom_call.1} parent=0 // pred_fallthru
    _
  // Predicated region
  $region10: #{tpu_custom_call.1} parent=0 // pred_check
    _
  $region11: #{tpu_custom_call.1} parent=0 // pred_check_branch
    %13 = sbr.rel (0) target = $region13
  $region12: #{tpu_custom_call.1} parent=0 // pred_region
    _
  $region13: #{tpu_custom_call.1} parent=0 // pred_fallthru
    _
  %v15 = vld [vmem:[%s0] sm:$0xf]
  %v16 = vld [vmem:[%s0 + $0x4] sm:$0xf]
  %v17 = vld [vmem:[%s0 + $0x8] sm:$0xf]
  %v18 = vld [vmem:[%s0 + $0xc] sm:$0xf]
  %v19 = vld [vmem:[%s0 + $0x10] sm:$0xf]
  %v20 = vld [vmem:[%s0 + $0x14] sm:$0xf]
  %v21 = vld [vmem:[%s1] sm:$0xf]
  %v22 = vld [vmem:[%s1 + $0x4] sm:$0xf]
  %v23 = vld [vmem:[%s1 + $0x8] sm:$0xf]
  %v24 = vld [vmem:[%s1 + $0xc] sm:$0xf]
  %v25 = vld [vmem:[%s1 + $0x10] sm:$0xf]
  %v26 = vld [vmem:[%s1 + $0x14] sm:$0xf]
  %v27 = vld [vmem:[%s1 + $0x18] sm:$0xf]
  %v28 = vld [vmem:[%s1 + $0x1c] sm:$0xf]
  %v29 = vld [vmem:[%s2] sm:$0xff]
  %v30 = vld [vmem:[%s2 + $0x8] sm:$0xff]
  %v31 = vld [vmem:[%s2 + $0x10] sm:$0xff]
  %v32 = vld [vmem:[%s2 + $0x18] sm:$0xff]
  %v33 = vld [vmem:[%s2 + $0x20] sm:$0xff]
  %v34 = vld [vmem:[%s2 + $0x28] sm:$0xff]
  %v41 = vunpack.c.l.b16 %v15
  %v42 = vunpack.c.l.b16 %v16
  %v43 = vunpack.c.l.b16 %v17
  %v44 = vunpack.c.l.b16 %v18
  %v45 = vunpack.c.l.b16 %v19
  %v46 = vunpack.c.l.b16 %v20
  %v47 = vpack.c.b16 %v42, %v41
  %v48 = vpack.c.b16 %v44, %v43
  %v49 = vpack.c.b16 %v46, %v45
  %v58 = vunpack.c.l.b16 %v21
  %v59 = vunpack.c.l.b16 %v22
  %v60 = vunpack.c.l.b16 %v23
  %v61 = vunpack.c.l.b16 %v24
  %v62 = vunpack.c.l.b16 %v25
  %v63 = vunpack.c.l.b16 %v26
  %v64 = vunpack.c.l.b16 %v27
  %v65 = vunpack.c.l.b16 %v28
  %v66 = vpack.c.b16 %v59, %v58
  %v67 = vpack.c.b16 %v61, %v60
  %v68 = vpack.c.b16 %v63, %v62
  %v69 = vpack.c.b16 %v65, %v64
  %vm74 = vcmask 523264
  %v76 = vsel %vm74, %v47, 0
  %v79 = vsel %vm74, %v48, 0
  %v82 = vsel %vm74, %v49, 0
  %84 = vmatpush.bf16.msra.mxu0 0
  %85 = vmatpush.bf16.msra.mxu0 0
  %86 = vmatpush.bf16.msra.mxu0 0
  %87 = vmatpush.bf16.msra.mxu0 0
  %88 = vmatpush.bf16.msra.mxu0 %v69
  %89 = vmatpush.bf16.msra.mxu0 %v68
  %90 = vmatpush.bf16.msra.mxu0 %v67
  %91 = vmatpush.bf16.msra.mxu0 %v66
  %92 = vmatmul.bf16.gmra.mxu0 %v76
  %v93 = vpop.f32.mrf.mxu0
  %v94 = vadd.f32 %v29, %v93
  %v95 = vpop.f32.mrf.mxu0
  %v96 = vadd.f32 %v30, %v95
  %97 = vmatmul.bf16.gmra.mxu0 %v79
  %v98 = vpop.f32.mrf.mxu0
  %v99 = vadd.f32 %v31, %v98
  %v100 = vpop.f32.mrf.mxu0
  %v101 = vadd.f32 %v32, %v100
  %102 = vmatmul.bf16.gmra.mxu0 %v82
  %v103 = vpop.f32.mrf.mxu0
  %v104 = vadd.f32 %v33, %v103
  %v105 = vpop.f32.mrf.mxu0
  %v106 = vadd.f32 %v34, %v105
  %107 = vdwg.mxu0
  %vm108 = vcmask 261120
  %109 = vst.msk [vmem:[%s3] sm:$0xff] %vm108, %v94
  %110 = vst.msk [vmem:[%s3 + $0x8] sm:$0xff] %vm108, %v96
  %111 = vst.msk [vmem:[%s3 + $0x10] sm:$0xff] %vm108, %v99
  %112 = vst.msk [vmem:[%s3 + $0x18] sm:$0xff] %vm108, %v101
  %113 = vst.msk [vmem:[%s3 + $0x20] sm:$0xff] %vm108, %v104
  %114 = vst.msk [vmem:[%s3 + $0x28] sm:$0xff] %vm108, %v106
  // Predicated region
  $region14: #{tpu_custom_call.1} parent=0 // pred_check
    _
  $region15: #{tpu_custom_call.1} parent=0 // pred_check_branch
    %116 = sbr.rel (0) target = $region17
  $region16: #{tpu_custom_call.1} parent=0 // pred_region
    _
  $region17: #{tpu_custom_call.1} parent=0 // pred_fallthru
    _
  // Predicated region
  $region18: #{tpu_custom_call.1} parent=0 // pred_check
    _
  $region19: #{tpu_custom_call.1} parent=0 // pred_check_branch
    %118 = sbr.rel (0) target = $region21
  $region20: #{tpu_custom_call.1} parent=0 // pred_region
    _
  $region21: #{tpu_custom_call.1} parent=0 // pred_fallthru
    _

</llo_original>
